<compile_context>
chip_gen: v7x
topology: tpu7x:2x2x1
jax: 0.10.0
libtpu: 0.0.40
codegen_flags: <defaults>
</compile_context>

<pallas_src>
import functools

import jax
import jax.numpy as jnp
from jax import lax
from jax.experimental import pallas as pl
from jax.experimental.pallas import tpu as pltpu


def _chamfer_kernel(x_ref, yt_ref, rowmin_ref, colmin_ref, xx_sc, rmin_sc, *,
                    n_valid, tile, padded):
    qi = pl.program_id(1)
    kj = pl.program_id(2)
    n_q = pl.num_programs(1)
    n_k = pl.num_programs(2)

    # ||x_i||^2 is invariant across the kj sweep (x's block index only depends
    # on qi) -> compute it once per (b, qi) strip.  Same spot initializes the
    # (T, 1) running row-min.
    @pl.when(kj == 0)
    def _init():
        xf = x_ref[0].astype(jnp.float32)                       # (T, C)
        xx_sc[...] = jnp.sum(xf * xf, axis=1, keepdims=True)    # (T, 1)
        rmin_sc[...] = jnp.full(rmin_sc.shape, jnp.inf, rmin_sc.dtype)

    xt = x_ref[0]                                               # (T, C)
    yt = yt_ref[0]                                              # (C, T) lane-dense
    yf = yt.astype(jnp.float32)
    yy = jnp.sum(yf * yf, axis=0, keepdims=True)                # (1, T)

    # Fold the -2 into the tiny (C, T) operand (a few vregs) instead of
    # scaling the (T, T) product afterwards.
    y_neg2 = yt * jnp.asarray(-2.0, dtype=yt.dtype)
    zz_neg2 = lax.dot_general(                                  # (T, T) f32
        xt, y_neg2, dimension_numbers=(((1,), (0,)), ((), ())),
        preferred_element_type=jnp.float32)

    # pdist[i, j] = ||x_i||^2 + ||y_j||^2 - 2 x_i.y_j   (== rx.T + ry - 2*zz)
    pdist = xx_sc[...] + yy + zz_neg2                           # (T, T) f32

    inf = jnp.float32(jnp.inf)

    # ---- min over j (torch pdist.min(2)[0]): per-step lane reduce folded
    # into a (T, 1) running min.  The padded-column mask is only paid on the
    # last kj tile.
    def _fold_rows(p):
        rmin_sc[...] = jnp.minimum(rmin_sc[...],
                                   jnp.min(p, axis=1, keepdims=True))

    if padded:
        @pl.when(kj < n_k - 1)
        def _rows_interior():
            _fold_rows(pdist)

        @pl.when(kj == n_k - 1)
        def _rows_tail():
            col_ids = kj * tile + lax.broadcasted_iota(jnp.int32, pdist.shape, 1)
            _fold_rows(jnp.where(col_ids < n_valid, pdist, inf))
    else:
        _fold_rows(pdist)

    # ---- min over i within this q tile (torch pdist.min(1)[0] partials):
    # each output block is written exactly once per (b, qi, kj) step and
    # folded across q tiles in the wrapper (keeps b/qi "parallel" for
    # megacore).  The padded-row mask is only paid on the last qi tile.
    if padded:
        @pl.when(qi < n_q - 1)
        def _cols_interior():
            colmin_ref[0, 0, :] = jnp.min(pdist, axis=0)

        @pl.when(qi == n_q - 1)
        def _cols_tail():
            row_ids = qi * tile + lax.broadcasted_iota(jnp.int32, pdist.shape, 0)
            colmin_ref[0, 0, :] = jnp.min(
                jnp.where(row_ids < n_valid, pdist, inf), axis=0)
    else:
        colmin_ref[0, 0, :] = jnp.min(pdist, axis=0)

    # ---- flush the running row-min once per (b, qi) strip.
    @pl.when(kj == n_k - 1)
    def _flush():
        rowmin_ref[0, 0, :] = rmin_sc[...][:, 0]


def chamfer_loss(x, y, input_channels, *, tile=None, vmem_limit_bytes=None):
    """x, y: (B, N, C_full). Returns the scalar chamfer loss (reduction='mean').

    Tile selection: T=512 by default (fits the default scoped-VMEM limit on
    v5e/v6e/v7x).  For N >= 8192 the tile auto-bumps to 1024 and the scoped
    VMEM limit is raised to 48 MiB -- safe on v7x (64 MiB physical per TC)
    and well under v5e/v6e's 128 MiB physical; override via `tile=` /
    `vmem_limit_bytes=` if desired.
    """
    B, N, C_full = x.shape
    assert y.shape == (B, N, C_full)
    C = min(int(input_channels), C_full)

    # Channel slice fused into the wrapper for both operands; y additionally
    # goes lane-dense as (B, C, N) so the cross term is a plain (T,C)@(C,T)
    # MXU dot with no in-kernel transpose.
    xs = x[:, :, :C]                               # (B, N, C)
    yt = jnp.swapaxes(y[:, :, :C], 1, 2)           # (B, C, N)

    if tile is None:
        tile = 1024 if N >= 8192 else 512
    if vmem_limit_bytes is None and tile >= 1024:
        vmem_limit_bytes = 48 * 1024 * 1024

    if N <= tile:
        T = N
        n_pad = 0
    else:
        T = tile                                   # multiple of 128
        n_pad = (-N) % T
    N_pad = N + n_pad
    padded = n_pad > 0
    if padded:
        xs = jnp.pad(xs, ((0, 0), (0, n_pad), (0, 0)))
        yt = jnp.pad(yt, ((0, 0), (0, 0), (0, n_pad)))
    num_t = N_pad // T

    kernel = functools.partial(
        _chamfer_kernel, n_valid=N, tile=T, padded=padded)

    itemsize = jnp.dtype(x.dtype).itemsize
    cost = pl.CostEstimate(
        flops=int(2 * B * N_pad * N_pad * C + 6 * B * N_pad * N_pad),
        transcendentals=0,
        bytes_accessed=int(
            B * N_pad * C * itemsize                 # x strips (reused over kj)
            + B * num_t * N_pad * C * itemsize       # y tiles (per q strip)
            + B * N_pad * 4 + B * num_t * N_pad * 4  # outputs
        ),
    )

    compiler_kwargs = dict(
        dimension_semantics=("parallel", "parallel", "arbitrary"))
    if vmem_limit_bytes is not None:
        compiler_kwargs["vmem_limit_bytes"] = int(vmem_limit_bytes)

    rowmin, colmin = pl.pallas_call(
        kernel,
        out_shape=(
            jax.ShapeDtypeStruct((B, 1, N_pad), jnp.float32),          # min over j
            jax.ShapeDtypeStruct((B * num_t, 1, N_pad), jnp.float32),  # partial min over i
        ),
        grid=(B, num_t, num_t),
        in_specs=[
            pl.BlockSpec((1, T, C), lambda b, qi, kj: (b, qi, 0)),
            pl.BlockSpec((1, C, T), lambda b, qi, kj: (b, 0, kj)),
        ],
        out_specs=(
            pl.BlockSpec((1, 1, T), lambda b, qi, kj: (b, 0, qi)),
            pl.BlockSpec((1, 1, T),
                         lambda b, qi, kj, _n=num_t: (b * _n + qi, 0, kj)),
        ),
        scratch_shapes=[
            pltpu.VMEM((T, 1), jnp.float32),   # ||x_i||^2, hoisted per qi strip
            pltpu.VMEM((T, 1), jnp.float32),   # running row-min over kj
        ],
        compiler_params=pltpu.CompilerParams(**compiler_kwargs),
        cost_estimate=cost,
    )(xs, yt)

    # torch: loss = mean(pdist.min(1)[0]) + mean(pdist.min(2)[0])
    min_over_i = jnp.min(colmin.reshape(B, num_t, N_pad)[:, :, :N], axis=1)  # (B, N)
    min_over_j = rowmin[:, 0, :N]                                            # (B, N)
    return jnp.mean(min_over_i) + jnp.mean(min_over_j)


def _chamfer_loss_ref(x, y, input_channels):
    x = x[:, :, :input_channels].astype(jnp.float32)
    y = y[:, :, :input_channels].astype(jnp.float32)
    xx = jnp.sum(x * x, axis=-1)                      # (B, N)
    yy = jnp.sum(y * y, axis=-1)                      # (B, N)
    zz = jnp.einsum("bic,bjc->bij", x, y)             # (B, N, N)
    pdist = xx[:, :, None] + yy[:, None, :] - 2.0 * zz
    return jnp.mean(jnp.min(pdist, axis=1)) + jnp.mean(jnp.min(pdist, axis=2))


if __name__ == "__main__":
    # ChamferLoss(input_channels=4) has no learnable parameters.
    B, N, C_FULL, INPUT_CHANNELS = 2, 8, 6, 4

    key = jax.random.PRNGKey(0)
    kx, ky = jax.random.split(key)
    x = jax.random.normal(kx, (B, N, C_FULL), dtype=jnp.float32)
    y = jax.random.normal(ky, (B, N, C_FULL), dtype=jnp.float32)

    loss = chamfer_loss(x, y, INPUT_CHANNELS)
    loss = jax.block_until_ready(loss)

    ref = _chamfer_loss_ref(x, y, INPUT_CHANNELS)
    assert jnp.allclose(loss, ref, rtol=1e-5, atol=1e-5), (loss, ref)

    print("KERNEL_OK")
</pallas_src>

<mosaic_0001>
module attributes {stable_mosaic.version = 11 : i64} {
  func.func @_chamfer_kernel(%arg0: i32, %arg1: i32, %arg2: i32, %arg3: memref<1x8x4xf32, #tpu.memory_space<vmem>>, %arg4: memref<1x4x8xf32, #tpu.memory_space<vmem>>, %arg5: memref<1x1x8xf32, #tpu.memory_space<vmem>>, %arg6: memref<1x1x8xf32, #tpu.memory_space<vmem>>, %arg7: memref<8x1xf32, #tpu.memory_space<vmem>>, %arg8: memref<8x1xf32, #tpu.memory_space<vmem>>) attributes {dimension_semantics = [#tpu.dimension_semantics<parallel>, #tpu.dimension_semantics<parallel>, #tpu.dimension_semantics<arbitrary>], iteration_bounds = array<i64: 2, 1, 1>, scalar_prefetch = 0 : i64, scratch_operands = 2 : i64, tpu.core_type = #tpu.core_type<tc>, window_params = [{transform_indices = @transform_0, window_bounds = array<i64: 1, 8, 4>}, {transform_indices = @transform_1, window_bounds = array<i64: 1, 4, 8>}, {transform_indices = @transform_2, window_bounds = array<i64: 1, 1, 8>}, {transform_indices = @transform_3, window_bounds = array<i64: 1, 1, 8>}]} {
    %c0_i32 = arith.constant 0 : i32
    %0 = arith.cmpi eq, %arg2, %c0_i32 : i32
    %1 = arith.extui %0 : i1 to i32
    %c0_i32_0 = arith.constant 0 : i32
    %2 = arith.cmpi ne, %1, %c0_i32_0 : i32
    scf.if %2 {
      %c0_21 = arith.constant 0 : index
      %c0_22 = arith.constant 0 : index
      %c0_23 = arith.constant 0 : index
      %30 = vector.load %arg3[%c0_21, %c0_22, %c0_23] : memref<1x8x4xf32, #tpu.memory_space<vmem>>, vector<1x8x4xf32>
      %31 = vector.shape_cast %30 : vector<1x8x4xf32> to vector<8x4xf32>
      %32 = arith.mulf %31, %31 : vector<8x4xf32>
      %cst_24 = arith.constant dense<0.000000e+00> : vector<8xf32>
      %33 = vector.multi_reduction <add>, %32, %cst_24 [1] : vector<8x4xf32> to vector<8xf32>
      %34 = vector.shape_cast %33 : vector<8xf32> to vector<8x1xf32>
      %c0_25 = arith.constant 0 : index
      %c0_26 = arith.constant 0 : index
      %35 = vector.load %arg7[%c0_25, %c0_26] : memref<8x1xf32, #tpu.memory_space<vmem>>, vector<8x1xf32>
      tpu.vector_store %arg7[%c0_25, %c0_26], %34 {strides = array<i32>} : memref<8x1xf32, #tpu.memory_space<vmem>>, vector<8x1xf32>,
      %cst_27 = arith.constant 0x7F800000 : f32
      %36 = vector.broadcast %cst_27 : f32 to vector<8x1xf32>
      %c0_28 = arith.constant 0 : index
      %c0_29 = arith.constant 0 : index
      %37 = vector.load %arg8[%c0_28, %c0_29] : memref<8x1xf32, #tpu.memory_space<vmem>>, vector<8x1xf32>
      tpu.vector_store %arg8[%c0_28, %c0_29], %36 {strides = array<i32>} : memref<8x1xf32, #tpu.memory_space<vmem>>, vector<8x1xf32>,
    } else {
    }
    %c0 = arith.constant 0 : index
    %c0_1 = arith.constant 0 : index
    %c0_2 = arith.constant 0 : index
    %3 = vector.load %arg3[%c0, %c0_1, %c0_2] : memref<1x8x4xf32, #tpu.memory_space<vmem>>, vector<1x8x4xf32>
    %4 = vector.shape_cast %3 : vector<1x8x4xf32> to vector<8x4xf32>
    %c0_3 = arith.constant 0 : index
    %c0_4 = arith.constant 0 : index
    %c0_5 = arith.constant 0 : index
    %5 = vector.load %arg4[%c0_3, %c0_4, %c0_5] : memref<1x4x8xf32, #tpu.memory_space<vmem>>, vector<1x4x8xf32>
    %6 = vector.shape_cast %5 : vector<1x4x8xf32> to vector<4x8xf32>
    %7 = arith.mulf %6, %6 : vector<4x8xf32>
    %cst = arith.constant dense<0.000000e+00> : vector<8xf32>
    %8 = vector.multi_reduction <add>, %7, %cst [0] : vector<4x8xf32> to vector<8xf32>
    %9 = vector.shape_cast %8 : vector<8xf32> to vector<1x8xf32>
    %cst_6 = arith.constant -2.000000e+00 : f32
    %10 = vector.broadcast %cst_6 : f32 to vector<4x8xf32>
    %11 = arith.mulf %6, %10 : vector<4x8xf32>
    %cst_7 = arith.constant dense<0.000000e+00> : vector<8x8xf32>
    %12 = tpu.matmul %4, %11, %cst_7 {dimension_numbers = #tpu.dot_dimension_numbers<[1], [0], [0], [1], [0, 0, 1, 1], [], []>} : vector<8x4xf32>, vector<4x8xf32>, vector<8x8xf32> -> vector<8x8xf32>
    %c0_8 = arith.constant 0 : index
    %c0_9 = arith.constant 0 : index
    %13 = vector.load %arg7[%c0_8, %c0_9] : memref<8x1xf32, #tpu.memory_space<vmem>>, vector<8x1xf32>
    %14 = vector.broadcast %13 : vector<8x1xf32> to vector<8x8xf32>
    %15 = vector.broadcast %9 : vector<1x8xf32> to vector<8x8xf32>
    %16 = arith.addf %14, %15 : vector<8x8xf32>
    %17 = arith.addf %16, %12 : vector<8x8xf32>
    %c0_10 = arith.constant 0 : index
    %c0_11 = arith.constant 0 : index
    %18 = vector.load %arg8[%c0_10, %c0_11] : memref<8x1xf32, #tpu.memory_space<vmem>>, vector<8x1xf32>
    %cst_12 = arith.constant dense<0x7F800000> : vector<8xf32>
    %19 = vector.multi_reduction <minimumf>, %17, %cst_12 [1] : vector<8x8xf32> to vector<8xf32>
    %20 = vector.shape_cast %19 : vector<8xf32> to vector<8x1xf32>
    %21 = arith.minimumf %18, %20 : vector<8x1xf32>
    %c0_13 = arith.constant 0 : index
    %c0_14 = arith.constant 0 : index
    %22 = vector.load %arg8[%c0_13, %c0_14] : memref<8x1xf32, #tpu.memory_space<vmem>>, vector<8x1xf32>
    tpu.vector_store %arg8[%c0_13, %c0_14], %21 {strides = array<i32>} : memref<8x1xf32, #tpu.memory_space<vmem>>, vector<8x1xf32>,
    %cst_15 = arith.constant dense<0x7F800000> : vector<8xf32>
    %23 = vector.multi_reduction <minimumf>, %17, %cst_15 [0] : vector<8x8xf32> to vector<8xf32>
    %c0_16 = arith.constant 0 : index
    %c0_17 = arith.constant 0 : index
    %c0_18 = arith.constant 0 : index
    %24 = vector.load %arg6[%c0_16, %c0_17, %c0_18] : memref<1x1x8xf32, #tpu.memory_space<vmem>>, vector<1x1x8xf32>
    %25 = vector.shape_cast %24 : vector<1x1x8xf32> to vector<8xf32>
    %26 = vector.shape_cast %23 : vector<8xf32> to vector<1x1x8xf32>
    tpu.vector_store %arg6[%c0_16, %c0_17, %c0_18], %26 {strides = array<i32>} : memref<1x1x8xf32, #tpu.memory_space<vmem>>, vector<1x1x8xf32>,
    %c0_i32_19 = arith.constant 0 : i32
    %27 = arith.cmpi eq, %arg2, %c0_i32_19 : i32
    %28 = arith.extui %27 : i1 to i32
    %c0_i32_20 = arith.constant 0 : i32
    %29 = arith.cmpi ne, %28, %c0_i32_20 : i32
    scf.if %29 {
      %c0_21 = arith.constant 0 : index
      %c0_22 = arith.constant 0 : index
      %30 = vector.load %arg8[%c0_21, %c0_22] : memref<8x1xf32, #tpu.memory_space<vmem>>, vector<8x1xf32>
      %31 = vector.shape_cast %30 : vector<8x1xf32> to vector<8xf32>
      %c0_23 = arith.constant 0 : index
      %c0_24 = arith.constant 0 : index
      %c0_25 = arith.constant 0 : index
      %32 = vector.load %arg5[%c0_23, %c0_24, %c0_25] : memref<1x1x8xf32, #tpu.memory_space<vmem>>, vector<1x1x8xf32>
      %33 = vector.shape_cast %32 : vector<1x1x8xf32> to vector<8xf32>
      %34 = vector.shape_cast %31 : vector<8xf32> to vector<1x1x8xf32>
      tpu.vector_store %arg5[%c0_23, %c0_24, %c0_25], %34 {strides = array<i32>} : memref<1x1x8xf32, #tpu.memory_space<vmem>>, vector<1x1x8xf32>,
    } else {
    }
    return
  }
  func.func @transform_0(%arg0: i32, %arg1: i32, %arg2: i32) -> (i32, i32, i32) {
    %c0_i32 = arith.constant 0 : i32
    %c0_i32_0 = arith.constant 0 : i32
    return %arg0, %arg1, %c0_i32 : i32, i32, i32
  }
  func.func @transform_1(%arg0: i32, %arg1: i32, %arg2: i32) -> (i32, i32, i32) {
    %c0_i32 = arith.constant 0 : i32
    %c0_i32_0 = arith.constant 0 : i32
    return %arg0, %c0_i32, %arg2 : i32, i32, i32
  }
  func.func @transform_2(%arg0: i32, %arg1: i32, %arg2: i32) -> (i32, i32, i32) {
    %c0_i32 = arith.constant 0 : i32
    %c0_i32_0 = arith.constant 0 : i32
    return %arg0, %c0_i32, %arg1 : i32, i32, i32
  }
  func.func @transform_3(%arg0: i32, %arg1: i32, %arg2: i32) -> (i32, i32, i32) {
    %c1_i32 = arith.constant 1 : i32
    %0 = arith.muli %arg0, %c1_i32 : i32
    %1 = arith.addi %0, %arg1 : i32
    %c0_i32 = arith.constant 0 : i32
    %c0_i32_0 = arith.constant 0 : i32
    return %1, %c0_i32, %arg2 : i32, i32, i32
  }
}

</mosaic_0001>

<llo_original>
// kernel: tpu_custom_call.1
$region0: #{tpu_custom_call.1}
  #allocation0 [shape = 'u32[]', space=smem, size = 0x4, offset = 0x4, fixed_abs, tag = 'smem constant byte address 0x4 - core index']
  #allocation1 [shape = 'u32[144,128]{1,0:T(1,128)}', space=vmem, size = 0x12000, scoped, tag = 'internal scratch']
  #allocation2 [shape = 'f32[8,1]{1,0:T(8,128)}', space=vmem, size = 0x1000, scoped, tag = 'scratch operand']
  #allocation3 [shape = 'f32[8,1]{1,0:T(8,128)}', space=vmem, size = 0x1000, scoped, tag = 'scratch operand']
  %s0 = inlined_call_operand.vmem [shape: f32[2,8,4], index: 0, kind: input, shape index: {}]
  %s1 = inlined_call_operand.vmem [shape: f32[2,4,8], index: 1, kind: input, shape index: {}]
  %s2 = inlined_call_operand.hbm [shape: f32[2,1,8], index: 2, kind: output, shape index: {0}]
  %s3 = inlined_call_operand.hbm [shape: f32[2,1,8], index: 3, kind: output, shape index: {1}]
  %4 = xla_tuple %s2, %s3
  %s5 = sld [smem:[#allocation0]]
  $region57: #{tpu_custom_call.1} parent=0
    _
  %s7 = ssub.s32 1, %s5
  %s8 = scalar_select 0, %s7, %s5
  $region1: #{tpu_custom_call.1} parent=0
    #allocation4 [shape = 'u8[1024]{0}', space=vmem, size = 0x400, scoped, tag = 'output window, operand 0']
    #allocation5 [shape = 's32[2]{0}', space=sflag, size = 0x8, scoped, tag = 'scoped memory for tpu_custom_call.1']
    #allocation6 [shape = 'u8[1024]{0}', space=vmem, size = 0x400, scoped, tag = 'output window, operand 1']
    #allocation7 [shape = 's32[2]{0}', space=sflag, size = 0x8, scoped, tag = 'scoped memory for tpu_custom_call.1']
    %9 = vsyncpa [#allocation5], 0
    %s10 = scalar_lea.sflag [#allocation5], 1
    %11 = vsyncpa %s10, 0
    %12 = vsyncpa [#allocation7], 0
    %s13 = scalar_lea.sflag [#allocation7], 1
    %14 = vsyncpa %s13, 0
    loop: start=0, step=1, limit=4
    $region2: #{tpu_custom_call.1} parent=1 // loop_pre_header
      _
    $region3: #{tpu_custom_call.1} parent=1 // loop_header
      %s16 = sphi 0, %s20
      %p17 = scmp.ge.s32.totalorder %s16, 4
      %s23 = sphi 0, %s42
      %s24 = sphi 0, %s38
      %s25 = sphi 0, %s34
      %s26 = sphi 0, %s23
      %s27 = sphi 0, %s24
      %s28 = sphi 0, %s25
      %s29 = sphi 0, %s26
      %s30 = sphi 0, %s27
      %s31 = sphi 0, %s28
      %s47 = sphi 0, %s49
      %s50 = sphi 0, %s47
      %s51 = sphi 0, %s50
      %s67 = sphi 0, %s51
      %s75 = sphi 0, %s77
      %s78 = sphi 0, %s75
      %s79 = sphi 0, %s78
      %s95 = sphi 0, %s79
      %s103 = sphi 0, %s105
      %s106 = sphi 0, %s103
      %s107 = sphi 0, %s106
      %s123 = sphi 0, %s107
      %s133 = sphi 0, %s135
      %s136 = sphi 0, %s133
      %s137 = sphi 0, %s136
      %s153 = sphi 0, %s137
    $region4: #{tpu_custom_call.1} parent=1 // loop_header_branch
      %19 = sbr.rel (%p17) target = $region8
    $region5: #{tpu_custom_call.1} parent=1 // loop_body
      %s21 = ssub.s32 %s16, 1
      %s22 = ssub.s32 %s16, 2
      %s32 = sadd.s32 1, %s25
      %p33 = scmp.ge.s32.totalorder %s32, 1
      %s34 = scalar_select %p33, 0, %s32
      %s35 = sadd.s32 1, %s24
      %s36 = scalar_select %p33, %s35, %s24
      %p37 = scmp.ge.s32.totalorder %s36, 1
      %s38 = scalar_select %p37, 0, %s36
      %s39 = sadd.s32 1, %s23
      %s40 = scalar_select %p37, %s39, %s23
      %p41 = scmp.ge.s32.totalorder %s40, 2
      %s42 = scalar_select %p41, 0, %s40
      %s43 = ssub.s32 %s23, %s42
      %s44 = ssub.s32 %s24, %s38
      %s45 = sor.u32 %s43, %s44
      %p46 = scmp.eq.s32.totalorder %s45, 0
      %s48 = sadd.s32 %s47, 1
      %s49 = scalar_select %p46, %s47, %s48
      %p52 = pneg %p46
      %p53 = scmp.eq.s32.totalorder %s16, 1
      %p54 = por %p52, %p53
      %p55 = scmp.ne.s32.totalorder %s47, %s50
      %p56 = scmp.eq.s32.totalorder %s16, 0
      %p57 = por %p55, %p56
      %p58 = scmp.ne.s32.totalorder %s47, %s50
      %p59 = scmp.eq.s32.totalorder %s21, 1
      %p60 = por %p58, %p59
      %p61 = scmp.ne.s32.totalorder %s50, %s51
      %p62 = scmp.eq.s32.totalorder %s21, 0
      %p63 = por %p61, %p62
      %p64 = scmp.ne.s32.totalorder %s50, %s51
      %p65 = scmp.eq.s32.totalorder %s22, 1
      %p66 = por %p64, %p65
      %p68 = scmp.ne.s32.totalorder %s51, %s67
      %p69 = scmp.eq.s32.totalorder %s22, 0
      %p70 = por %p68, %p69
      %s71 = ssub.s32 %s23, %s42
      %s72 = ssub.s32 %s25, %s34
      %s73 = sor.u32 %s71, %s72
      %p74 = scmp.eq.s32.totalorder %s73, 0
      %s76 = sadd.s32 %s75, 1
      %s77 = scalar_select %p74, %s75, %s76
      %p80 = pneg %p74
      %p81 = scmp.eq.s32.totalorder %s16, 1
      %p82 = por %p80, %p81
      %p83 = scmp.ne.s32.totalorder %s75, %s78
      %p84 = scmp.eq.s32.totalorder %s16, 0
      %p85 = por %p83, %p84
      %p86 = scmp.ne.s32.totalorder %s75, %s78
      %p87 = scmp.eq.s32.totalorder %s21, 1
      %p88 = por %p86, %p87
      %p89 = scmp.ne.s32.totalorder %s78, %s79
      %p90 = scmp.eq.s32.totalorder %s21, 0
      %p91 = por %p89, %p90
      %p92 = scmp.ne.s32.totalorder %s78, %s79
      %p93 = scmp.eq.s32.totalorder %s22, 1
      %p94 = por %p92, %p93
      %p96 = scmp.ne.s32.totalorder %s79, %s95
      %p97 = scmp.eq.s32.totalorder %s22, 0
      %p98 = por %p96, %p97
      %s99 = ssub.s32 %s23, %s42
      %s100 = ssub.s32 %s24, %s38
      %s101 = sor.u32 %s99, %s100
      %p102 = scmp.eq.s32.totalorder %s101, 0
      %s104 = sadd.s32 %s103, 1
      %s105 = scalar_select %p102, %s103, %s104
      %p108 = pneg %p102
      %p109 = scmp.eq.s32.totalorder %s16, 1
      %p110 = por %p108, %p109
      %p111 = scmp.ne.s32.totalorder %s103, %s106
      %p112 = scmp.eq.s32.totalorder %s16, 0
      %p113 = por %p111, %p112
      %p114 = scmp.ne.s32.totalorder %s103, %s106
      %p115 = scmp.eq.s32.totalorder %s21, 1
      %p116 = por %p114, %p115
      %p117 = scmp.ne.s32.totalorder %s106, %s107
      %p118 = scmp.eq.s32.totalorder %s21, 0
      %p119 = por %p117, %p118
      %p120 = scmp.ne.s32.totalorder %s106, %s107
      %p121 = scmp.eq.s32.totalorder %s22, 1
      %p122 = por %p120, %p121
      %p124 = scmp.ne.s32.totalorder %s107, %s123
      %p125 = scmp.eq.s32.totalorder %s22, 0
      %p126 = por %p124, %p125
      %s127 = sadd.s32 %s23, %s24
      %s128 = sadd.s32 %s42, %s38
      %s129 = ssub.s32 %s127, %s128
      %s130 = ssub.s32 %s25, %s34
      %s131 = sor.u32 %s129, %s130
      %p132 = scmp.eq.s32.totalorder %s131, 0
      %s134 = sadd.s32 %s133, 1
      %s135 = scalar_select %p132, %s133, %s134
      %p138 = pneg %p132
      %p139 = scmp.eq.s32.totalorder %s16, 1
      %p140 = por %p138, %p139
      %p141 = scmp.ne.s32.totalorder %s133, %s136
      %p142 = scmp.eq.s32.totalorder %s16, 0
      %p143 = por %p141, %p142
      %p144 = scmp.ne.s32.totalorder %s133, %s136
      %p145 = scmp.eq.s32.totalorder %s21, 1
      %p146 = por %p144, %p145
      %p147 = scmp.ne.s32.totalorder %s136, %s137
      %p148 = scmp.eq.s32.totalorder %s21, 0
      %p149 = por %p147, %p148
      %p150 = scmp.ne.s32.totalorder %s136, %s137
      %p151 = scmp.eq.s32.totalorder %s22, 1
      %p152 = por %p150, %p151
      %p154 = scmp.ne.s32.totalorder %s137, %s153
      %p155 = scmp.eq.s32.totalorder %s22, 0
      %p156 = por %p154, %p155
      %p157 = scmp.le.s32.totalorder 1, %s16
      %p158 = scmp.lt.s32.totalorder %s16, 3
      %p159 = pnand %p157, %p158
      %p160 = pneg %p159
      // Predicated region
      $region9: #{tpu_custom_call.1} parent=5 // pred_check
        _
      $region10: #{tpu_custom_call.1} parent=5 // pred_check_branch
        %162 = sbr.rel (%p159) target = $region12
      $region11: #{tpu_custom_call.1} parent=5 // pred_region
        %s163 = ssub.s32 %s16, 1
      $region12: #{tpu_custom_call.1} parent=5 // pred_fallthru
        _
      %p164 = scmp.lt.s32.totalorder %s16, 2
      // Predicated region
      $region13: #{tpu_custom_call.1} parent=5 // pred_check
        %p165 = pneg %p164
      $region14: #{tpu_custom_call.1} parent=5 // pred_check_branch
        %167 = sbr.rel (%p165) target = $region16
      $region15: #{tpu_custom_call.1} parent=5 // pred_region
        // Predicated region
        $region17: #{tpu_custom_call.1} parent=15 // pred_check
          %p168 = pneg %p57
        $region18: #{tpu_custom_call.1} parent=15 // pred_check_branch
          %170 = sbr.rel (%p168) target = $region20
        $region19: #{tpu_custom_call.1} parent=15 // pred_region
          %p171 = scmp.lt.s32.totalorder %s23, 1
          %s172 = scalar_select %p171, %s23, 1
          %p173 = scmp.lt.s32.totalorder %s24, 0
          %s174 = scalar_select %p173, %s24, 0
          %s175 = sadd.s32 %s174, %s172
          %s176 = smul.addr %s175, 8
          %s177 = scalar_lea.vmem %s0, %s176
        $region20: #{tpu_custom_call.1} parent=15 // pred_fallthru
          _
        // Predicated region
        $region21: #{tpu_custom_call.1} parent=15 // pred_check
          %p178 = pneg %p85
        $region22: #{tpu_custom_call.1} parent=15 // pred_check_branch
          %180 = sbr.rel (%p178) target = $region24
        $region23: #{tpu_custom_call.1} parent=15 // pred_region
          %p181 = scmp.lt.s32.totalorder %s23, 1
          %s182 = scalar_select %p181, %s23, 1
          %p183 = scmp.lt.s32.totalorder %s25, 0
          %s184 = scalar_select %p183, %s25, 0
          %s185 = sadd.s32 %s184, %s182
          %s186 = smul.addr %s185, 4
          %s187 = scalar_lea.vmem %s1, %s186
        $region24: #{tpu_custom_call.1} parent=15 // pred_fallthru
          _
      $region16: #{tpu_custom_call.1} parent=5 // pred_fallthru
        _
      %p188 = scmp.le.s32.totalorder 1, %s16
      %p189 = scmp.lt.s32.totalorder %s16, 3
      %p190 = pnand %p188, %p189
      %p191 = pneg %p190
      // Predicated region
      $region25: #{tpu_custom_call.1} parent=5 // pred_check
        _
      $region26: #{tpu_custom_call.1} parent=5 // pred_check_branch
        %193 = sbr.rel (%p190) target = $region28
      $region27: #{tpu_custom_call.1} parent=5 // pred_region
        %s194 = ssub.s32 %s16, 1
        %p195 = scmp.lt.s32.totalorder %s26, 1
        %s196 = scalar_select %p195, %s26, 1
        %p197 = scmp.lt.s32.totalorder %s27, 0
        %s198 = scalar_select %p197, %s27, 0
        %s199 = sadd.s32 %s198, %s196
        %s200 = smul.addr %s199, 8
        %s201 = scalar_lea.vmem %s0, %s200
        %p202 = pneg %p63
        %p203 = pneg %p60
        %p204 = scmp.lt.s32.totalorder %s26, 1
        %s205 = scalar_select %p204, %s26, 1
        %p206 = scmp.lt.s32.totalorder %s28, 0
        %s207 = scalar_select %p206, %s28, 0
        %s208 = sadd.s32 %s207, %s205
        %s209 = smul.addr %s208, 4
        %s210 = scalar_lea.vmem %s1, %s209
        %p211 = pneg %p91
        %p212 = pneg %p88
        %p213 = pneg %p119
        %p214 = pneg %p116
        %s215 = sand.u32 %s106, 1
        %s216 = scalar_lea.sflag [#allocation5], %s215
        %s217 = sand.u32 %s106, 1
        %s218 = scalar_lea.vmem [#allocation4], %s217
        %p219 = pneg %p149
        %p220 = pneg %p146
        %s221 = sand.u32 %s136, 1
        %s222 = scalar_lea.sflag [#allocation7], %s221
        %s223 = sand.u32 %s136, 1
        %s224 = scalar_lea.vmem [#allocation6], %s223
        %p225 = scmp.lt.s32.totalorder %s26, 1
        %s226 = scalar_select %p225, %s26, 1
        %p227 = scmp.lt.s32.totalorder %s27, 0
        %s228 = scalar_select %p227, %s27, 0
        %s229 = sadd.s32 %s228, %s226
        %s230 = smul.addr %s229, 8
        %s231 = scalar_lea.vmem %s0, %s230
        %p232 = scmp.lt.s32.totalorder %s26, 1
        %s233 = scalar_select %p232, %s26, 1
        %p234 = scmp.lt.s32.totalorder %s28, 0
        %s235 = scalar_select %p234, %s28, 0
        %s236 = sadd.s32 %s235, %s233
        %s237 = smul.addr %s236, 4
        %s238 = scalar_lea.vmem %s1, %s237
        %s239 = sadd.s32 %s26, %s27
        %p240 = scmp.eq.s32.totalorder %s28, 0
        // Predicated region
        $region29: #{tpu_custom_call.1} parent=27 // pred_check
          %p241 = pneg %p240
        $region30: #{tpu_custom_call.1} parent=27 // pred_check_branch
          %243 = sbr.rel (%p241) target = $region32
        $region31: #{tpu_custom_call.1} parent=27 // pred_region
          %v244 = vld [vmem:[%s231] sm:$0xff]
          %v245 = vmul.f32 %v244, %v244
          %vm246 = vcmask 31744
          %v247 = vsel %vm246, %v245, 0.0
          %248 = vadd.xlane.f32.xlu0 %v247
          %v249 = vpop.xlane.xlu0 %248
          %vm250 = vcmask 7168
          %251 = vst.msk [vmem:[#allocation2] sm:$0xff] %vm250, %v249
          %252 = vst.msk [vmem:[#allocation3] sm:$0xff] %vm250, inf
        $region32: #{tpu_custom_call.1} parent=27 // pred_fallthru
          _
        %v253 = vld [vmem:[%s231] sm:$0xff]
        %v254 = vld [vmem:[%s238] sm:$0xf]
        %v255 = vmul.f32 %v254, %v254
        %vm256 = vcmask 60416
        %v257 = vsel %vm256, %v255, 0.0
        %v258 = vrot.slane %v257, 4
        %v259 = vadd.f32 %v257, %v258
        %v260 = vrot.slane %v259, 2
        %v261 = vadd.f32 %v259, %v260
        %v262 = vrot.slane %v261, 1
        %v263 = vadd.f32 %v261, %v262
        %v264 = vmul.f32 %v254, -2.0
        %vm265 = vcmask 31744
        %v267 = vsel %vm265, %v253, 0
        %vm269 = vcmask 1043456
        %v271 = vsel %vm269, %v264, 0
        %273 = vmatprep.subr.mxu0 0.0
        %274 = vmatpush1.msra.mxu0 %v271
        %275 = vmatprep.subr.mxu0 0.0
        %276 = vmatpush1.msra.mxu0 0.0
        %277 = vmatprep.subr.mxu0 0.0
        %278 = vmatpush1.msra.mxu0 0.0
        %279 = vmatprep.subr.mxu0 0.0
        %280 = vmatpush1.msra.mxu0 0.0
        %281 = vmatprep.subr.mxu0 0.0
        %282 = vmatpush1.msra.mxu0 0.0
        %283 = vmatprep.subr.mxu0 0.0
        %284 = vmatpush1.msra.mxu0 0.0
        %285 = vmatprep.subr.mxu0 0.0
        %286 = vmatpush1.msra.mxu0 0.0
        %287 = vmatprep.subr.mxu0 0.0
        %288 = vmatpush1.msra.mxu0 0.0
        %289 = vmatprep.subr.mxu0 0.0
        %290 = vmatpush1.msra.mxu0 0.0
        %291 = vmatprep.subr.mxu0 0.0
        %292 = vmatpush1.msra.mxu0 0.0
        %293 = vmatprep.subr.mxu0 0.0
        %294 = vmatpush1.msra.mxu0 0.0
        %295 = vmatprep.subr.mxu0 0.0
        %296 = vmatpush1.msra.mxu0 0.0
        %297 = vmatprep.subr.mxu0 0.0
        %298 = vmatpush1.msra.mxu0 0.0
        %299 = vmatprep.subr.mxu0 0.0
        %300 = vmatpush1.msra.mxu0 0.0
        %301 = vmatprep.subr.mxu0 0.0
        %302 = vmatpush1.msra.mxu0 0.0
        %303 = vmatprep.subr.mxu0 0.0
        %304 = vmatpush1.msra.mxu0 0.0
        %305 = vmatprep.subr.mxu0 0.0
        %306 = vmatpush1.msra.mxu0 0.0
        %307 = vmatprep.subr.mxu0 0.0
        %308 = vmatpush1.msra.mxu0 0.0
        %309 = vmatprep.subr.mxu0 0.0
        %310 = vmatpush1.msra.mxu0 0.0
        %311 = vmatprep.subr.mxu0 0.0
        %312 = vmatpush1.msra.mxu0 0.0
        %313 = vmatprep.subr.mxu0 0.0
        %314 = vmatpush1.msra.mxu0 0.0
        %315 = vmatprep.subr.mxu0 0.0
        %316 = vmatpush1.msra.mxu0 0.0
        %317 = vmatprep.subr.mxu0 0.0
        %318 = vmatpush1.msra.mxu0 0.0
        %319 = vmatprep.subr.mxu0 0.0
        %320 = vmatpush1.msra.mxu0 0.0
        %321 = vmatprep.subr.mxu0 0.0
        %322 = vmatpush1.msra.mxu0 0.0
        %323 = vmatprep.subr.mxu0 0.0
        %324 = vmatpush1.msra.mxu0 0.0
        %325 = vmatprep.subr.mxu0 0.0
        %326 = vmatpush1.msra.mxu0 0.0
        %327 = vmatprep.subr.mxu0 0.0
        %328 = vmatpush1.msra.mxu0 0.0
        %329 = vmatprep.subr.mxu0 0.0
        %330 = vmatpush1.msra.mxu0 0.0
        %331 = vmatprep.subr.mxu0 0.0
        %332 = vmatpush1.msra.mxu0 0.0
        %333 = vmatprep.subr.mxu0 0.0
        %334 = vmatpush1.msra.mxu0 0.0
        %335 = vmatprep.subr.mxu0 0.0
        %336 = vmatpush1.msra.mxu0 0.0
        %337 = vmatprep.mubr.f32.mxu0 0.0
        %338 = vmatmul.mubr.f32.gmra.mrb[0].mxu0 %v267
        %v339 = vpop.f32.mrb[0].mxu0
        %v340 = vadd.f32 0.0, %v339
        %v341 = vpop.f32.mrb[0].mxu0
        %342 = vdwg.mxu0
        %v343 = vld [vmem:[#allocation2] sm:$0xff]
        %345 = vset.pattern.permute.xlu0 0
        %346 = vperm.xlu0 %345, %v343
        %v347 = vpop.permute.xlu0 %346
        %v349 = vadd.f32 %v347, %v263
        %v350 = vadd.f32 %v349, %v340
        %v351 = vld [vmem:[#allocation3] sm:$0xff]
        %vm352 = vcmask 64512
        %v353 = vsel %vm352, %v350, inf
        %354 = vmin.xlane.f32.xlu0 %v353
        %v355 = vpop.xlane.xlu0 %354
        %v356 = vmin.f32 %v351, %v355
        %vm357 = vcmask 7168
        %358 = vst.msk [vmem:[#allocation3] sm:$0xff] %vm357, %v356
        %v359 = vrot.slane %v353, 4
        %v360 = vmin.f32 %v353, %v359
        %v361 = vrot.slane %v360, 2
        %v362 = vmin.f32 %v360, %v361
        %v363 = vrot.slane %v362, 1
        %v364 = vmin.f32 %v362, %v363
        %vm365 = vcmask 57344
        %366 = vst.msk [vmem:[%s224] sm:$0x1] %vm365, %v364
        // Predicated region
        $region33: #{tpu_custom_call.1} parent=27 // pred_check
          %p367 = pneg %p240
        $region34: #{tpu_custom_call.1} parent=27 // pred_check_branch
          %369 = sbr.rel (%p367) target = $region36
        $region35: #{tpu_custom_call.1} parent=27 // pred_region
          %v370 = vld [vmem:[#allocation3] sm:$0xff]
          %372 = vset.pattern.permute.xlu0 0
          %373 = vperm.xlu0 %372, %v370
          %v374 = vpop.permute.xlu0 %373
          %v375 = vlaneseq
          %v376 = vand.u32 %v375, 127
          %v377 = vlaneseq
          %v378 = vshrl.u32 %v377, 7
          %v379 = vsub.s32 %v376, %v378
          %v380 = vrot.slane %v374, %v379
          %382 = vst.msk [vmem:[%s218] sm:$0x1] %vm365, %v380
        $region36: #{tpu_custom_call.1} parent=27 // pred_fallthru
          _
        %s383 = sand.u32 %s106, 1
        %s384 = scalar_lea.sflag [#allocation5], %s383
        %s385 = sand.u32 %s106, 1
        %s386 = scalar_lea.vmem [#allocation4], %s385
        %s387 = sand.u32 %s136, 1
        %s388 = scalar_lea.sflag [#allocation7], %s387
        %s389 = sand.u32 %s136, 1
        %s390 = scalar_lea.vmem [#allocation6], %s389
        // Predicated region
        $region37: #{tpu_custom_call.1} parent=27 // pred_check
          %p391 = pneg %p116
        $region38: #{tpu_custom_call.1} parent=27 // pred_check_branch
          %393 = sbr.rel (%p391) target = $region40
        $region39: #{tpu_custom_call.1} parent=27 // pred_region
          %s395 = ssub.s32 16, 16
          %396 = vsyncadd %s384, %s395
          %s397 = sadd.s32 %s27, %s26
          %s398 = smul.addr %s397, 16
          %s399 = scalar_lea.hbm %s2, %s398
          %s401 = sshll.u32 %s386, 4
          %s402 = int_to_ptr.vmem [resolvable:$true] %s401
          %404 = dma.vmem_to_hbm [thread:$0]  %s402, 16, %s399, %s384
        $region40: #{tpu_custom_call.1} parent=27 // pred_fallthru
          _
        // Predicated region
        $region41: #{tpu_custom_call.1} parent=27 // pred_check
          %p405 = pneg %p146
        $region42: #{tpu_custom_call.1} parent=27 // pred_check_branch
          %407 = sbr.rel (%p405) target = $region44
        $region43: #{tpu_custom_call.1} parent=27 // pred_region
          %s408 = sadd.s32 %s26, %s27
          %s410 = ssub.s32 16, 16
          %411 = vsyncadd %s388, %s410
          %s412 = sadd.s32 %s28, %s408
          %s413 = smul.addr %s412, 16
          %s414 = scalar_lea.hbm %s3, %s413
          %s416 = sshll.u32 %s390, 4
          %s417 = int_to_ptr.vmem [resolvable:$true] %s416
          %419 = dma.vmem_to_hbm [thread:$0]  %s417, 16, %s414, %s388
        $region44: #{tpu_custom_call.1} parent=27 // pred_fallthru
          _
      $region28: #{tpu_custom_call.1} parent=5 // pred_fallthru
        _
      %p420 = scmp.le.s32.totalorder 2, %s16
      // Predicated region
      $region45: #{tpu_custom_call.1} parent=5 // pred_check
        %p421 = pneg %p420
      $region46: #{tpu_custom_call.1} parent=5 // pred_check_branch
        %423 = sbr.rel (%p421) target = $region48
      $region47: #{tpu_custom_call.1} parent=5 // pred_region
        %s424 = ssub.s32 %s16, 2
        // Predicated region
        $region49: #{tpu_custom_call.1} parent=47 // pred_check
          %p425 = pneg %p122
        $region50: #{tpu_custom_call.1} parent=47 // pred_check_branch
          %427 = sbr.rel (%p425) target = $region52
        $region51: #{tpu_custom_call.1} parent=47 // pred_region
          %s428 = sand.u32 %s107, 1
          %s429 = scalar_lea.sflag [#allocation5], %s428
          %s430 = sand.u32 %s107, 1
          %s431 = scalar_lea.vmem [#allocation4], %s430
          %432 = dma.done %s429, 16
        $region52: #{tpu_custom_call.1} parent=47 // pred_fallthru
          _
        // Predicated region
        $region53: #{tpu_custom_call.1} parent=47 // pred_check
          %p433 = pneg %p152
        $region54: #{tpu_custom_call.1} parent=47 // pred_check_branch
          %435 = sbr.rel (%p433) target = $region56
        $region55: #{tpu_custom_call.1} parent=47 // pred_region
          %s436 = sand.u32 %s137, 1
          %s437 = scalar_lea.sflag [#allocation7], %s436
          %s438 = sand.u32 %s137, 1
          %s439 = scalar_lea.vmem [#allocation6], %s438
          %440 = dma.done %s437, 16
        $region56: #{tpu_custom_call.1} parent=47 // pred_fallthru
          _
      $region48: #{tpu_custom_call.1} parent=5 // pred_fallthru
        _
    $region6: #{tpu_custom_call.1} parent=1 // loop_footer
      %s20 = sadd.s32 1, %s16
    $region7: #{tpu_custom_call.1} parent=1 // loop_footer_branch
      %15 = sbr.rel target = $region3
    $region8: #{tpu_custom_call.1} parent=1 // loop_exit
      _
    %441 = vsyncpa [#allocation5], 1
    %s442 = scalar_lea.sflag [#allocation5], 1
    %443 = vsyncpa %s442, 1
    %444 = vsyncpa [#allocation7], 1
    %s445 = scalar_lea.sflag [#allocation7], 1
    %446 = vsyncpa %s445, 1

</llo_original>
